<compile_context>
chip_gen: v7x
topology: tpu7x:2x2x1
jax: 0.10.0
libtpu: 0.0.40
codegen_flags: <defaults>
</compile_context>

<pallas_src>
import functools

import jax
import jax.numpy as jnp
from jax.experimental import pallas as pl
from jax.experimental.pallas import tpu as pltpu


def _round_up(x, m):
    return ((x + m - 1) // m) * m


def _pick_tk(in_pad, requested=None):
    if requested is not None and in_pad % requested == 0:
        return requested
    for tk in (2048, 1024, 512, 256, 128):
        if in_pad % tk == 0:
            return tk
    return in_pad


def _default_compute_dtype():
    try:
        kind = jax.devices()[0].device_kind.lower()
    except Exception:
        return jnp.float32
    # bf16 MXU rate + halved DMA bytes on v6e/v7x; epilogue stays f32.
    if "v6" in kind or "v7" in kind:
        return jnp.bfloat16
    return jnp.float32


# ---------------------------------------------------------------------------
# Kernels
# ---------------------------------------------------------------------------

def mlp_fused_kernel(x_ref, w1_ref, b1_ref, w2_ref, b2_ref, o_ref):
    """Single-step path: W1 fully VMEM-resident, whole MLP fused per batch tile."""
    h = jnp.dot(x_ref[...], w1_ref[...], preferred_element_type=jnp.float32)
    h = jnp.maximum(h + b1_ref[...], 0.0)
    o = jnp.dot(h.astype(w2_ref.dtype), w2_ref[...],
                preferred_element_type=jnp.float32)
    o = jnp.maximum(o + b2_ref[...], 0.0)
    o_ref[...] = o.astype(o_ref.dtype)


def mlp_ktiled_kernel(x_ref, w1_ref, b1_ref, w2_ref, b2_ref, o_ref, acc_ref):
    """K-reduction path for very large input_size: layer-1 partial products
    accumulate in f32 scratch; epilogue fuses bias+ReLU, layer 2, bias+ReLU."""
    k = pl.program_id(1)

    @pl.when(k == 0)
    def _():
        acc_ref[...] = jnp.zeros_like(acc_ref)

    acc_ref[...] += jnp.dot(x_ref[...], w1_ref[...],
                            preferred_element_type=jnp.float32)

    @pl.when(k == pl.num_programs(1) - 1)
    def _():
        h = jnp.maximum(acc_ref[...] + b1_ref[...], 0.0)
        o = jnp.dot(h.astype(w2_ref.dtype), w2_ref[...],
                    preferred_element_type=jnp.float32)
        o = jnp.maximum(o + b2_ref[...], 0.0)
        o_ref[...] = o.astype(o_ref.dtype)


# ---------------------------------------------------------------------------
# One-time parameter preparation (padding hoisted out of the hot path)
# ---------------------------------------------------------------------------

def prepare_mlp_params(w1, b1, w2, b2, compute_dtype=None):
    """Pad weights/biases to lane geometry once.  Weights are stored as
    (in_features, out_features) — pre-transposed vs. PyTorch's nn.Linear.
    Zero padding keeps the math exact: padded K rows of W1 are zero, padded
    hidden columns give ReLU(0+0)=0 against zero W2 rows, padded output
    columns are sliced off in the forward."""
    if compute_dtype is None:
        compute_dtype = _default_compute_dtype()

    in_sz, hid = w1.shape
    hid2, out_sz = w2.shape
    assert hid2 == hid

    in_pad = _round_up(in_sz, 128)
    hid_pad = _round_up(hid, 128)
    out_pad = _round_up(out_sz, 128)

    w1p = jnp.pad(w1.astype(compute_dtype),
                  ((0, in_pad - in_sz), (0, hid_pad - hid)))
    w2p = jnp.pad(w2.astype(compute_dtype),
                  ((0, hid_pad - hid), (0, out_pad - out_sz)))
    b1p = jnp.pad(b1.astype(jnp.float32), (0, hid_pad - hid)).reshape(1, hid_pad)
    b2p = jnp.pad(b2.astype(jnp.float32), (0, out_pad - out_sz)).reshape(1, out_pad)
    return w1p, b1p, w2p, b2p


# ---------------------------------------------------------------------------
# Forward
# ---------------------------------------------------------------------------

@functools.partial(jax.jit,
                   static_argnames=("out_size", "force_k_tiled", "tk"))
def mlp_forward(x, w1p, b1p, w2p, b2p, *, out_size, force_k_tiled=False, tk=None):
    """x: (B, ...) flattened to (B, input_size) like nn.Flatten().
    w1p/b1p/w2p/b2p come from prepare_mlp_params (already padded/cast)."""
    compute_dtype = w1p.dtype
    out_dtype = x.dtype
    itemsize = jnp.dtype(compute_dtype).itemsize
    out_itemsize = jnp.dtype(out_dtype).itemsize

    B = x.shape[0]
    x2d = x.reshape(B, -1)
    in_sz = x2d.shape[1]
    in_pad, hid_pad = w1p.shape
    _, out_pad = w2p.shape
    assert in_sz <= in_pad

    # --- x preparation: cast, pad K columns only if needed, tile the batch.
    x2d = x2d.astype(compute_dtype)
    if in_sz != in_pad:
        # Padded columns meet zero W1 rows -> contribute exactly zero.
        x2d = jnp.pad(x2d, ((0, 0), (0, in_pad - in_sz)))

    if B <= 512:
        # Single batch tile: block equals the full batch dim, so no sublane
        # constraint and *no* batch padding / copy at all.
        tm, Bp = B, B
    else:
        tm = 128
        Bp = _round_up(B, tm)
        if Bp != B:
            x2d = jnp.pad(x2d, ((0, Bp - B), (0, 0)))
    batch_tiles = Bp // tm

    # --- path selection: resident W1 unless it is genuinely large.
    w1_bytes = in_pad * hid_pad * itemsize
    use_k_tiled = force_k_tiled or (w1_bytes > 8 * 1024 * 1024)

    flops = 2 * Bp * in_pad * hid_pad + 2 * Bp * hid_pad * out_pad
    out_shape = jax.ShapeDtypeStruct((Bp, out_pad), out_dtype)

    if not use_k_tiled:
        # Approximate VMEM footprint (double-buffer x/out, weights counted 2x
        # conservatively, plus f32 intermediates).
        vmem_est = (2 * tm * in_pad * itemsize
                    + 2 * tm * out_pad * out_itemsize
                    + 2 * (in_pad * hid_pad + hid_pad * out_pad) * itemsize
                    + 2 * (hid_pad + out_pad) * 4
                    + tm * (hid_pad + out_pad) * 4)
        vmem_limit = int(min(max(2 * vmem_est, 16 * 1024 * 1024),
                             64 * 1024 * 1024))
        cost = pl.CostEstimate(
            flops=flops, transcendentals=0,
            bytes_accessed=(Bp * in_pad + in_pad * hid_pad
                            + hid_pad * out_pad) * itemsize
                           + (hid_pad + out_pad) * 4
                           + Bp * out_pad * out_itemsize)

        out_padded = pl.pallas_call(
            mlp_fused_kernel,
            out_shape=out_shape,
            grid_spec=pltpu.PrefetchScalarGridSpec(
                num_scalar_prefetch=0,
                grid=(batch_tiles,),
                in_specs=[
                    pl.BlockSpec((tm, in_pad), lambda i: (i, 0)),        # x streamed
                    pl.BlockSpec((in_pad, hid_pad), lambda i: (0, 0)),   # W1 resident
                    pl.BlockSpec((1, hid_pad), lambda i: (0, 0)),        # b1 resident
                    pl.BlockSpec((hid_pad, out_pad), lambda i: (0, 0)),  # W2 resident
                    pl.BlockSpec((1, out_pad), lambda i: (0, 0)),        # b2 resident
                ],
                out_specs=pl.BlockSpec((tm, out_pad), lambda i: (i, 0)),
            ),
            compiler_params=pltpu.CompilerParams(
                dimension_semantics=("parallel",),
                vmem_limit_bytes=vmem_limit,
            ),
            cost_estimate=cost,
        )(x2d, w1p, b1p, w2p, b2p)
    else:
        tk_eff = _pick_tk(in_pad, tk)
        k_tiles = in_pad // tk_eff

        vmem_est = (2 * tm * tk_eff * itemsize
                    + 2 * tk_eff * hid_pad * itemsize
                    + 2 * tm * out_pad * out_itemsize
                    + 2 * hid_pad * out_pad * itemsize
                    + tm * hid_pad * 4
                    + 2 * (hid_pad + out_pad) * 4)
        vmem_limit = int(min(max(2 * vmem_est, 16 * 1024 * 1024),
                             64 * 1024 * 1024))
        cost = pl.CostEstimate(
            flops=flops, transcendentals=0,
            bytes_accessed=(Bp * in_pad
                            + batch_tiles * in_pad * hid_pad   # W1 per batch tile
                            + hid_pad * out_pad) * itemsize
                           + (hid_pad + out_pad) * 4
                           + Bp * out_pad * out_itemsize)

        out_padded = pl.pallas_call(
            mlp_ktiled_kernel,
            out_shape=out_shape,
            grid_spec=pltpu.PrefetchScalarGridSpec(
                num_scalar_prefetch=0,
                grid=(batch_tiles, k_tiles),
                in_specs=[
                    pl.BlockSpec((tm, tk_eff), lambda i, k: (i, k)),         # x
                    pl.BlockSpec((tk_eff, hid_pad), lambda i, k: (k, 0)),     # W1 slab
                    pl.BlockSpec((1, hid_pad), lambda i, k: (0, 0)),          # b1
                    pl.BlockSpec((hid_pad, out_pad), lambda i, k: (0, 0)),    # W2
                    pl.BlockSpec((1, out_pad), lambda i, k: (0, 0)),          # b2
                ],
                out_specs=pl.BlockSpec((tm, out_pad), lambda i, k: (i, 0)),
                scratch_shapes=[pltpu.VMEM((tm, hid_pad), jnp.float32)],
            ),
            compiler_params=pltpu.CompilerParams(
                # Batch tiles independent -> parallel; K is a carried
                # reduction -> arbitrary (and last in the grid).
                dimension_semantics=("parallel", "arbitrary"),
                vmem_limit_bytes=vmem_limit,
            ),
            cost_estimate=cost,
        )(x2d, w1p, b1p, w2p, b2p)

    return out_padded[:B, :out_size]


if __name__ == "__main__":
    # x is (B, C, H, W) = (2, 4, 16, 16) -> input_size = 1024, as in nn.Flatten().
    B, C, H, W = 2, 4, 16, 16
    input_size = C * H * W
    hidden_size = 32
    output_size = 16

    key = jax.random.PRNGKey(0)
    kx, kw1, kb1, kw2, kb2 = jax.random.split(key, 5)

    x = jax.random.normal(kx, (B, C, H, W), dtype=jnp.float32)

    # Deterministic init mimicking nn.Linear's uniform(-1/sqrt(fan_in), ...).
    # Stored as (in_features, out_features) — already transposed vs. PyTorch.
    bound1 = 1.0 / jnp.sqrt(jnp.float32(input_size))
    w1 = jax.random.uniform(kw1, (input_size, hidden_size), jnp.float32, -bound1, bound1)
    b1 = jax.random.uniform(kb1, (hidden_size,), jnp.float32, -bound1, bound1)

    bound2 = 1.0 / jnp.sqrt(jnp.float32(hidden_size))
    w2 = jax.random.uniform(kw2, (hidden_size, output_size), jnp.float32, -bound2, bound2)
    b2 = jax.random.uniform(kb2, (output_size,), jnp.float32, -bound2, bound2)

    # Plain-JAX reference (same math as the PyTorch module).
    x2d = x.reshape(B, -1)
    ref = jnp.maximum(jnp.maximum(x2d @ w1 + b1, 0.0) @ w2 + b2, 0.0)

    # f32 resident-W1 fast path (the default for these sizes).
    p_f32 = prepare_mlp_params(w1, b1, w2, b2, compute_dtype=jnp.float32)
    out = jax.block_until_ready(mlp_forward(x, *p_f32, out_size=output_size))
    assert out.shape == (B, output_size)
    assert jnp.allclose(out, ref, atol=1e-4, rtol=1e-4)

    # bf16 compute path (v6e/v7x MXU rate); accumulation/epilogue stay f32.
    p_bf16 = prepare_mlp_params(w1, b1, w2, b2, compute_dtype=jnp.bfloat16)
    out_bf16 = jax.block_until_ready(mlp_forward(x, *p_bf16, out_size=output_size))
    assert out_bf16.shape == (B, output_size)
    assert jnp.allclose(out_bf16, ref, atol=1e-1, rtol=1e-1)

    # K-tiled reduction path (used automatically only for very large input_size);
    # forced here with tk=256 so the accumulator/epilogue logic is exercised.
    out_kt = jax.block_until_ready(
        mlp_forward(x, *p_f32, out_size=output_size, force_k_tiled=True, tk=256))
    assert out_kt.shape == (B, output_size)
    assert jnp.allclose(out_kt, ref, atol=1e-4, rtol=1e-4)

    print("KERNEL_OK")
</pallas_src>

<mosaic_0001>
module attributes {stable_mosaic.version = 11 : i64} {
  func.func @mlp_fused_kernel(%arg0: i32, %arg1: memref<2x1024xf32, #tpu.memory_space<vmem>>, %arg2: memref<1024x128xf32, #tpu.memory_space<vmem>>, %arg3: memref<1x128xf32, #tpu.memory_space<vmem>>, %arg4: memref<128x128xf32, #tpu.memory_space<vmem>>, %arg5: memref<1x128xf32, #tpu.memory_space<vmem>>, %arg6: memref<2x128xf32, #tpu.memory_space<vmem>>) attributes {dimension_semantics = [#tpu.dimension_semantics<parallel>], iteration_bounds = array<i64: 1>, scalar_prefetch = 0 : i64, scratch_operands = 0 : i64, tpu.core_type = #tpu.core_type<tc>, window_params = [{transform_indices = @transform_0, window_bounds = array<i64: 2, 1024>}, {pipeline_mode = #tpu.pipeline_mode<synchronous>, transform_indices = @transform_1, window_bounds = array<i64: 1024, 128>}, {pipeline_mode = #tpu.pipeline_mode<synchronous>, transform_indices = @transform_2, window_bounds = array<i64: 1, 128>}, {pipeline_mode = #tpu.pipeline_mode<synchronous>, transform_indices = @transform_3, window_bounds = array<i64: 128, 128>}, {pipeline_mode = #tpu.pipeline_mode<synchronous>, transform_indices = @transform_4, window_bounds = array<i64: 1, 128>}, {transform_indices = @transform_5, window_bounds = array<i64: 2, 128>}]} {
    %c0 = arith.constant 0 : index
    %c0_0 = arith.constant 0 : index
    %0 = vector.load %arg1[%c0, %c0_0] : memref<2x1024xf32, #tpu.memory_space<vmem>>, vector<2x1024xf32>
    %c0_1 = arith.constant 0 : index
    %c0_2 = arith.constant 0 : index
    %1 = vector.load %arg2[%c0_1, %c0_2] : memref<1024x128xf32, #tpu.memory_space<vmem>>, vector<1024x128xf32>
    %cst = arith.constant dense<0.000000e+00> : vector<2x128xf32>
    %2 = tpu.matmul %0, %1, %cst {dimension_numbers = #tpu.dot_dimension_numbers<[1], [0], [0], [1], [0, 0, 1, 1], [], []>} : vector<2x1024xf32>, vector<1024x128xf32>, vector<2x128xf32> -> vector<2x128xf32>
    %c0_3 = arith.constant 0 : index
    %c0_4 = arith.constant 0 : index
    %3 = vector.load %arg3[%c0_3, %c0_4] : memref<1x128xf32, #tpu.memory_space<vmem>>, vector<1x128xf32>
    %4 = vector.broadcast %3 : vector<1x128xf32> to vector<2x128xf32>
    %5 = arith.addf %2, %4 : vector<2x128xf32>
    %cst_5 = arith.constant 0.000000e+00 : f32
    %6 = vector.broadcast %cst_5 : f32 to vector<2x128xf32>
    %7 = arith.maximumf %5, %6 : vector<2x128xf32>
    %c0_6 = arith.constant 0 : index
    %c0_7 = arith.constant 0 : index
    %8 = vector.load %arg4[%c0_6, %c0_7] : memref<128x128xf32, #tpu.memory_space<vmem>>, vector<128x128xf32>
    %cst_8 = arith.constant dense<0.000000e+00> : vector<2x128xf32>
    %9 = tpu.matmul %7, %8, %cst_8 {dimension_numbers = #tpu.dot_dimension_numbers<[1], [0], [0], [1], [0, 0, 1, 1], [], []>} : vector<2x128xf32>, vector<128x128xf32>, vector<2x128xf32> -> vector<2x128xf32>
    %c0_9 = arith.constant 0 : index
    %c0_10 = arith.constant 0 : index
    %10 = vector.load %arg5[%c0_9, %c0_10] : memref<1x128xf32, #tpu.memory_space<vmem>>, vector<1x128xf32>
    %11 = vector.broadcast %10 : vector<1x128xf32> to vector<2x128xf32>
    %12 = arith.addf %9, %11 : vector<2x128xf32>
    %cst_11 = arith.constant 0.000000e+00 : f32
    %13 = vector.broadcast %cst_11 : f32 to vector<2x128xf32>
    %14 = arith.maximumf %12, %13 : vector<2x128xf32>
    %c0_12 = arith.constant 0 : index
    %c0_13 = arith.constant 0 : index
    %15 = vector.load %arg6[%c0_12, %c0_13] : memref<2x128xf32, #tpu.memory_space<vmem>>, vector<2x128xf32>
    tpu.vector_store %arg6[%c0_12, %c0_13], %14 {strides = array<i32>} : memref<2x128xf32, #tpu.memory_space<vmem>>, vector<2x128xf32>,
    return
  }
  func.func @transform_0(%arg0: i32) -> (i32, i32) {
    %c0_i32 = arith.constant 0 : i32
    %c0_i32_0 = arith.constant 0 : i32
    return %arg0, %c0_i32 : i32, i32
  }
  func.func @transform_1(%arg0: i32) -> (i32, i32) {
    %c0_i32 = arith.constant 0 : i32
    %c0_i32_0 = arith.constant 0 : i32
    %c0_i32_1 = arith.constant 0 : i32
    return %c0_i32, %c0_i32_0 : i32, i32
  }
  func.func @transform_2(%arg0: i32) -> (i32, i32) {
    %c0_i32 = arith.constant 0 : i32
    %c0_i32_0 = arith.constant 0 : i32
    %c0_i32_1 = arith.constant 0 : i32
    return %c0_i32, %c0_i32_0 : i32, i32
  }
  func.func @transform_3(%arg0: i32) -> (i32, i32) {
    %c0_i32 = arith.constant 0 : i32
    %c0_i32_0 = arith.constant 0 : i32
    %c0_i32_1 = arith.constant 0 : i32
    return %c0_i32, %c0_i32_0 : i32, i32
  }
  func.func @transform_4(%arg0: i32) -> (i32, i32) {
    %c0_i32 = arith.constant 0 : i32
    %c0_i32_0 = arith.constant 0 : i32
    %c0_i32_1 = arith.constant 0 : i32
    return %c0_i32, %c0_i32_0 : i32, i32
  }
  func.func @transform_5(%arg0: i32) -> (i32, i32) {
    %c0_i32 = arith.constant 0 : i32
    %c0_i32_0 = arith.constant 0 : i32
    return %arg0, %c0_i32 : i32, i32
  }
}

</mosaic_0001>

<llo_original>
// kernel: mlp_forward.1
$region0: #{mlp_forward.1}
  #allocation0 [shape = 'u32[]', space=smem, size = 0x4, offset = 0x4, fixed_abs, tag = 'smem constant byte address 0x4 - core index']
  #allocation1 [shape = 'u32[144,128]{1,0:T(1,128)}', space=vmem, size = 0x12000, scoped, tag = 'internal scratch']
  %s0 = inlined_call_operand.vmem [shape: f32[2,1024], index: 0, kind: input, shape index: {}]
  %s1 = inlined_call_operand.hbm [shape: f32[1024,128], index: 1, kind: input, shape index: {}]
  %s2 = inlined_call_operand.vmem [shape: f32[1,128], index: 2, kind: input, shape index: {}]
  %s3 = inlined_call_operand.vmem [shape: f32[128,128], index: 3, kind: input, shape index: {}]
  %s4 = inlined_call_operand.vmem [shape: f32[1,128], index: 4, kind: input, shape index: {}]
  %s5 = inlined_call_operand.hbm [shape: f32[2,128], index: 5, kind: output, shape index: {}]
  %s6 = sld [smem:[#allocation0]]
  $region34: #{mlp_forward.1} parent=0
    _
  %s8 = ssub.s32 1, %s6
  %s9 = scalar_select 0, %s8, %s6
  $region1: #{mlp_forward.1} parent=0
    #allocation2 [shape = 'u8[524288]{0}', space=vmem, size = 0x80000, scoped, tag = 'input window, operand 1, single buffered']
    #allocation3 [shape = 's32[1]{0}', space=sflag, size = 0x4, scoped, tag = 'scoped memory for mlp_forward.1']
    #allocation4 [shape = 's32[1]{0}', space=sflag, size = 0x4, scoped, tag = 'scoped memory for mlp_forward.1']
    #allocation5 [shape = 'u8[1024]{0}', space=vmem, size = 0x400, scoped, tag = 'output window, operand 0, single buffered']
    %10 = vsyncpa [#allocation3], 0
    %11 = vsyncpa [#allocation4], 0
    // Predicated region
    $region2: #{mlp_forward.1} parent=1 // pred_check
      _
    $region3: #{mlp_forward.1} parent=1 // pred_check_branch
      %13 = sbr.rel (0) target = $region5
    $region4: #{mlp_forward.1} parent=1 // pred_region
      _
    $region5: #{mlp_forward.1} parent=1 // pred_fallthru
      _
    // Predicated region
    $region6: #{mlp_forward.1} parent=1 // pred_check
      _
    $region7: #{mlp_forward.1} parent=1 // pred_check_branch
      %15 = sbr.rel (0) target = $region9
    $region8: #{mlp_forward.1} parent=1 // pred_region
      %s17 = ssub.s32 16384, 16384
      %18 = vsyncadd [#allocation3], %s17
      %s19 = sshll.u32 [#allocation2], 4
      %s20 = int_to_ptr.vmem [resolvable:$true] %s19
      %25 = dma.hbm_to_vmem [thread:$0]  %s1, 16384, %s20, [#allocation3], 128, 128, 8
    $region9: #{mlp_forward.1} parent=1 // pred_fallthru
      _
    // Predicated region
    $region10: #{mlp_forward.1} parent=1 // pred_check
      _
    $region11: #{mlp_forward.1} parent=1 // pred_check_branch
      %27 = sbr.rel (0) target = $region13
    $region12: #{mlp_forward.1} parent=1 // pred_region
      _
    $region13: #{mlp_forward.1} parent=1 // pred_fallthru
      _
    // Predicated region
    $region14: #{mlp_forward.1} parent=1 // pred_check
      _
    $region15: #{mlp_forward.1} parent=1 // pred_check_branch
      %29 = sbr.rel (0) target = $region17
    $region16: #{mlp_forward.1} parent=1 // pred_region
      _
    $region17: #{mlp_forward.1} parent=1 // pred_fallthru
      _
    // Predicated region
    $region18: #{mlp_forward.1} parent=1 // pred_check
      _
    $region19: #{mlp_forward.1} parent=1 // pred_check_branch
      %31 = sbr.rel (0) target = $region21
    $region20: #{mlp_forward.1} parent=1 // pred_region
      _
    $region21: #{mlp_forward.1} parent=1 // pred_fallthru
      _
    // Predicated region
    $region22: #{mlp_forward.1} parent=1 // pred_check
      _
    $region23: #{mlp_forward.1} parent=1 // pred_check_branch
      %33 = sbr.rel (0) target = $region25
    $region24: #{mlp_forward.1} parent=1 // pred_region
      %34 = dma.done [#allocation3], 16384
    $region25: #{mlp_forward.1} parent=1 // pred_fallthru
      _
    %v35 = vld [vmem:[%s0] sm:$0xff]
    %v36 = vld [vmem:[%s0 + $0x8] sm:$0xff]
    %v37 = vld [vmem:[#allocation2] sm:$0xff]
    %v38 = vld [vmem:[#allocation2 + $0x8] sm:$0xff]
    %v39 = vld [vmem:[#allocation2 + $0x10] sm:$0xff]
    %v40 = vld [vmem:[#allocation2 + $0x18] sm:$0xff]
    %v41 = vld [vmem:[#allocation2 + $0x20] sm:$0xff]
    %v42 = vld [vmem:[#allocation2 + $0x28] sm:$0xff]
    %v43 = vld [vmem:[#allocation2 + $0x30] sm:$0xff]
    %v44 = vld [vmem:[#allocation2 + $0x38] sm:$0xff]
    %v45 = vld [vmem:[#allocation2 + $0x40] sm:$0xff]
    %v46 = vld [vmem:[#allocation2 + $0x48] sm:$0xff]
    %v47 = vld [vmem:[#allocation2 + $0x50] sm:$0xff]
    %v48 = vld [vmem:[#allocation2 + $0x58] sm:$0xff]
    %v49 = vld [vmem:[#allocation2 + $0x60] sm:$0xff]
    %v50 = vld [vmem:[#allocation2 + $0x68] sm:$0xff]
    %v51 = vld [vmem:[#allocation2 + $0x70] sm:$0xff]
    %v52 = vld [vmem:[#allocation2 + $0x78] sm:$0xff]
    %v53 = vld [vmem:[#allocation2 + $0x80] sm:$0xff]
    %v54 = vld [vmem:[#allocation2 + $0x88] sm:$0xff]
    %v55 = vld [vmem:[#allocation2 + $0x90] sm:$0xff]
    %v56 = vld [vmem:[#allocation2 + $0x98] sm:$0xff]
    %v57 = vld [vmem:[#allocation2 + $0xa0] sm:$0xff]
    %v58 = vld [vmem:[#allocation2 + $0xa8] sm:$0xff]
    %v59 = vld [vmem:[#allocation2 + $0xb0] sm:$0xff]
    %v60 = vld [vmem:[#allocation2 + $0xb8] sm:$0xff]
    %v61 = vld [vmem:[#allocation2 + $0xc0] sm:$0xff]
    %v62 = vld [vmem:[#allocation2 + $0xc8] sm:$0xff]
    %v63 = vld [vmem:[#allocation2 + $0xd0] sm:$0xff]
    %v64 = vld [vmem:[#allocation2 + $0xd8] sm:$0xff]
    %v65 = vld [vmem:[#allocation2 + $0xe0] sm:$0xff]
    %v66 = vld [vmem:[#allocation2 + $0xe8] sm:$0xff]
    %v67 = vld [vmem:[#allocation2 + $0xf0] sm:$0xff]
    %v68 = vld [vmem:[#allocation2 + $0xf8] sm:$0xff]
    %v69 = vld [vmem:[#allocation2 + $0x100] sm:$0xff]
    %v70 = vld [vmem:[#allocation2 + $0x108] sm:$0xff]
    %v71 = vld [vmem:[#allocation2 + $0x110] sm:$0xff]
    %v72 = vld [vmem:[#allocation2 + $0x118] sm:$0xff]
    %v73 = vld [vmem:[#allocation2 + $0x120] sm:$0xff]
    %v74 = vld [vmem:[#allocation2 + $0x128] sm:$0xff]
    %v75 = vld [vmem:[#allocation2 + $0x130] sm:$0xff]
    %v76 = vld [vmem:[#allocation2 + $0x138] sm:$0xff]
    %v77 = vld [vmem:[#allocation2 + $0x140] sm:$0xff]
    %v78 = vld [vmem:[#allocation2 + $0x148] sm:$0xff]
    %v79 = vld [vmem:[#allocation2 + $0x150] sm:$0xff]
    %v80 = vld [vmem:[#allocation2 + $0x158] sm:$0xff]
    %v81 = vld [vmem:[#allocation2 + $0x160] sm:$0xff]
    %v82 = vld [vmem:[#allocation2 + $0x168] sm:$0xff]
    %v83 = vld [vmem:[#allocation2 + $0x170] sm:$0xff]
    %v84 = vld [vmem:[#allocation2 + $0x178] sm:$0xff]
    %v85 = vld [vmem:[#allocation2 + $0x180] sm:$0xff]
    %v86 = vld [vmem:[#allocation2 + $0x188] sm:$0xff]
    %v87 = vld [vmem:[#allocation2 + $0x190] sm:$0xff]
    %v88 = vld [vmem:[#allocation2 + $0x198] sm:$0xff]
    %v89 = vld [vmem:[#allocation2 + $0x1a0] sm:$0xff]
    %v90 = vld [vmem:[#allocation2 + $0x1a8] sm:$0xff]
    %v91 = vld [vmem:[#allocation2 + $0x1b0] sm:$0xff]
    %v92 = vld [vmem:[#allocation2 + $0x1b8] sm:$0xff]
    %v93 = vld [vmem:[#allocation2 + $0x1c0] sm:$0xff]
    %v94 = vld [vmem:[#allocation2 + $0x1c8] sm:$0xff]
    %v95 = vld [vmem:[#allocation2 + $0x1d0] sm:$0xff]
    %v96 = vld [vmem:[#allocation2 + $0x1d8] sm:$0xff]
    %v97 = vld [vmem:[#allocation2 + $0x1e0] sm:$0xff]
    %v98 = vld [vmem:[#allocation2 + $0x1e8] sm:$0xff]
    %v99 = vld [vmem:[#allocation2 + $0x1f0] sm:$0xff]
    %v100 = vld [vmem:[#allocation2 + $0x1f8] sm:$0xff]
    %v101 = vld [vmem:[#allocation2 + $0x200] sm:$0xff]
    %v102 = vld [vmem:[#allocation2 + $0x208] sm:$0xff]
    %v103 = vld [vmem:[#allocation2 + $0x210] sm:$0xff]
    %v104 = vld [vmem:[#allocation2 + $0x218] sm:$0xff]
    %v105 = vld [vmem:[#allocation2 + $0x220] sm:$0xff]
    %v106 = vld [vmem:[#allocation2 + $0x228] sm:$0xff]
    %v107 = vld [vmem:[#allocation2 + $0x230] sm:$0xff]
    %v108 = vld [vmem:[#allocation2 + $0x238] sm:$0xff]
    %v109 = vld [vmem:[#allocation2 + $0x240] sm:$0xff]
    %v110 = vld [vmem:[#allocation2 + $0x248] sm:$0xff]
    %v111 = vld [vmem:[#allocation2 + $0x250] sm:$0xff]
    %v112 = vld [vmem:[#allocation2 + $0x258] sm:$0xff]
    %v113 = vld [vmem:[#allocation2 + $0x260] sm:$0xff]
    %v114 = vld [vmem:[#allocation2 + $0x268] sm:$0xff]
    %v115 = vld [vmem:[#allocation2 + $0x270] sm:$0xff]
    %v116 = vld [vmem:[#allocation2 + $0x278] sm:$0xff]
    %v117 = vld [vmem:[#allocation2 + $0x280] sm:$0xff]
    %v118 = vld [vmem:[#allocation2 + $0x288] sm:$0xff]
    %v119 = vld [vmem:[#allocation2 + $0x290] sm:$0xff]
    %v120 = vld [vmem:[#allocation2 + $0x298] sm:$0xff]
    %v121 = vld [vmem:[#allocation2 + $0x2a0] sm:$0xff]
    %v122 = vld [vmem:[#allocation2 + $0x2a8] sm:$0xff]
    %v123 = vld [vmem:[#allocation2 + $0x2b0] sm:$0xff]
    %v124 = vld [vmem:[#allocation2 + $0x2b8] sm:$0xff]
    %v125 = vld [vmem:[#allocation2 + $0x2c0] sm:$0xff]
    %v126 = vld [vmem:[#allocation2 + $0x2c8] sm:$0xff]
    %v127 = vld [vmem:[#allocation2 + $0x2d0] sm:$0xff]
    %v128 = vld [vmem:[#allocation2 + $0x2d8] sm:$0xff]
    %v129 = vld [vmem:[#allocation2 + $0x2e0] sm:$0xff]
    %v130 = vld [vmem:[#allocation2 + $0x2e8] sm:$0xff]
    %v131 = vld [vmem:[#allocation2 + $0x2f0] sm:$0xff]
    %v132 = vld [vmem:[#allocation2 + $0x2f8] sm:$0xff]
    %v133 = vld [vmem:[#allocation2 + $0x300] sm:$0xff]
    %v134 = vld [vmem:[#allocation2 + $0x308] sm:$0xff]
    %v135 = vld [vmem:[#allocation2 + $0x310] sm:$0xff]
    %v136 = vld [vmem:[#allocation2 + $0x318] sm:$0xff]
    %v137 = vld [vmem:[#allocation2 + $0x320] sm:$0xff]
    %v138 = vld [vmem:[#allocation2 + $0x328] sm:$0xff]
    %v139 = vld [vmem:[#allocation2 + $0x330] sm:$0xff]
    %v140 = vld [vmem:[#allocation2 + $0x338] sm:$0xff]
    %v141 = vld [vmem:[#allocation2 + $0x340] sm:$0xff]
    %v142 = vld [vmem:[#allocation2 + $0x348] sm:$0xff]
    %v143 = vld [vmem:[#allocation2 + $0x350] sm:$0xff]
    %v144 = vld [vmem:[#allocation2 + $0x358] sm:$0xff]
    %v145 = vld [vmem:[#allocation2 + $0x360] sm:$0xff]
    %v146 = vld [vmem:[#allocation2 + $0x368] sm:$0xff]
    %v147 = vld [vmem:[#allocation2 + $0x370] sm:$0xff]
    %v148 = vld [vmem:[#allocation2 + $0x378] sm:$0xff]
    %v149 = vld [vmem:[#allocation2 + $0x380] sm:$0xff]
    %v150 = vld [vmem:[#allocation2 + $0x388] sm:$0xff]
    %v151 = vld [vmem:[#allocation2 + $0x390] sm:$0xff]
    %v152 = vld [vmem:[#allocation2 + $0x398] sm:$0xff]
    %v153 = vld [vmem:[#allocation2 + $0x3a0] sm:$0xff]
    %v154 = vld [vmem:[#allocation2 + $0x3a8] sm:$0xff]
    %v155 = vld [vmem:[#allocation2 + $0x3b0] sm:$0xff]
    %v156 = vld [vmem:[#allocation2 + $0x3b8] sm:$0xff]
    %v157 = vld [vmem:[#allocation2 + $0x3c0] sm:$0xff]
    %v158 = vld [vmem:[#allocation2 + $0x3c8] sm:$0xff]
    %v159 = vld [vmem:[#allocation2 + $0x3d0] sm:$0xff]
    %v160 = vld [vmem:[#allocation2 + $0x3d8] sm:$0xff]
    %v161 = vld [vmem:[#allocation2 + $0x3e0] sm:$0xff]
    %v162 = vld [vmem:[#allocation2 + $0x3e8] sm:$0xff]
    %v163 = vld [vmem:[#allocation2 + $0x3f0] sm:$0xff]
    %v164 = vld [vmem:[#allocation2 + $0x3f8] sm:$0xff]
    %v165 = vld [vmem:[%s2] sm:$0x1]
    %v167 = vlaneseq
    %v168 = vshrl.u32 %v167, 7
    %v169 = vsub.s32 0, %v168
    %v170 = vrot.slane %v165, %v169
    %v174 = vcombine.high %v35, %v35
    %v176 = vunpack.c.l.s4 1983009808
    %v177 = vunpack.c.0.s8 %v176
    %v178 = vlaneseq
    %v179 = vshrl.u32 %v178, 7
    %v180 = vsub.s32 %v177, %v179
    %v181 = vrot.slane %v35, %v180
    %v183 = vunpack.c.l.s4 1983009808
    %v184 = vunpack.c.0.s8 %v183
    %v185 = vlaneseq
    %v186 = vshrl.u32 %v185, 7
    %v187 = vsub.s32 %v184, %v186
    %v188 = vrot.slane %v174, %v187
    %v189 = vcombine.high %v181, %v181
    %v190 = vcombine.high %v188, %v188
    %v191 = vcombine.high %v36, %v36
    %v193 = vunpack.c.l.s4 1983009808
    %v194 = vunpack.c.0.s8 %v193
    %v195 = vlaneseq
    %v196 = vshrl.u32 %v195, 7
    %v197 = vsub.s32 %v194, %v196
    %v198 = vrot.slane %v36, %v197
    %v200 = vunpack.c.l.s4 1983009808
    %v201 = vunpack.c.0.s8 %v200
    %v202 = vlaneseq
    %v203 = vshrl.u32 %v202, 7
    %v204 = vsub.s32 %v201, %v203
    %v205 = vrot.slane %v191, %v204
    %v206 = vcombine.high %v198, %v198
    %v207 = vcombine.high %v205, %v205
    %216 = vmatprep.subr.mxu0 0.0
    %217 = vmatpush1.msra.mxu0 %v37
    %218 = vmatprep.subr.mxu0 0.0
    %219 = vmatpush1.msra.mxu0 %v38
    %220 = vmatprep.subr.mxu0 0.0
    %221 = vmatpush1.msra.mxu0 %v39
    %222 = vmatprep.subr.mxu0 0.0
    %223 = vmatpush1.msra.mxu0 %v40
    %224 = vmatprep.subr.mxu0 0.0
    %225 = vmatpush1.msra.mxu0 %v41
    %226 = vmatprep.subr.mxu0 0.0
    %227 = vmatpush1.msra.mxu0 %v42
    %228 = vmatprep.subr.mxu0 0.0
    %229 = vmatpush1.msra.mxu0 %v43
    %230 = vmatprep.subr.mxu0 0.0
    %231 = vmatpush1.msra.mxu0 %v44
    %232 = vmatprep.subr.mxu0 0.0
    %233 = vmatpush1.msra.mxu0 %v45
    %234 = vmatprep.subr.mxu0 0.0
    %235 = vmatpush1.msra.mxu0 %v46
    %236 = vmatprep.subr.mxu0 0.0
    %237 = vmatpush1.msra.mxu0 %v47
    %238 = vmatprep.subr.mxu0 0.0
    %239 = vmatpush1.msra.mxu0 %v48
    %240 = vmatprep.subr.mxu0 0.0
    %241 = vmatpush1.msra.mxu0 %v49
    %242 = vmatprep.subr.mxu0 0.0
    %243 = vmatpush1.msra.mxu0 %v50
    %244 = vmatprep.subr.mxu0 0.0
    %245 = vmatpush1.msra.mxu0 %v51
    %246 = vmatprep.subr.mxu0 0.0
    %247 = vmatpush1.msra.mxu0 %v52
    %248 = vmatprep.subr.mxu0 0.0
    %249 = vmatpush1.msra.mxu0 %v53
    %250 = vmatprep.subr.mxu0 0.0
    %251 = vmatpush1.msra.mxu0 %v54
    %252 = vmatprep.subr.mxu0 0.0
    %253 = vmatpush1.msra.mxu0 %v55
    %254 = vmatprep.subr.mxu0 0.0
    %255 = vmatpush1.msra.mxu0 %v56
    %256 = vmatprep.subr.mxu0 0.0
    %257 = vmatpush1.msra.mxu0 %v57
    %258 = vmatprep.subr.mxu0 0.0
    %259 = vmatpush1.msra.mxu0 %v58
    %260 = vmatprep.subr.mxu0 0.0
    %261 = vmatpush1.msra.mxu0 %v59
    %262 = vmatprep.subr.mxu0 0.0
    %263 = vmatpush1.msra.mxu0 %v60
    %264 = vmatprep.subr.mxu0 0.0
    %265 = vmatpush1.msra.mxu0 %v61
    %266 = vmatprep.subr.mxu0 0.0
    %267 = vmatpush1.msra.mxu0 %v62
    %268 = vmatprep.subr.mxu0 0.0
    %269 = vmatpush1.msra.mxu0 %v63
    %270 = vmatprep.subr.mxu0 0.0
    %271 = vmatpush1.msra.mxu0 %v64
    %272 = vmatprep.subr.mxu0 0.0
    %273 = vmatpush1.msra.mxu0 %v65
    %274 = vmatprep.subr.mxu0 0.0
    %275 = vmatpush1.msra.mxu0 %v66
    %276 = vmatprep.subr.mxu0 0.0
    %277 = vmatpush1.msra.mxu0 %v67
    %278 = vmatprep.subr.mxu0 0.0
    %279 = vmatpush1.msra.mxu0 %v68
    %280 = vmatprep.mubr.f32.mxu0 %v189
    %281 = vmatmul.mubr.f32.gmra.mrb[0].mxu0 %v181
    %v282 = vpop.f32.mrb[0].mxu0
    %v283 = vadd.f32 %v170, %v282
    %v284 = vpop.f32.mrb[0].mxu0
    %285 = vdwg.mxu0
    %286 = vmatprep.subr.mxu0 0.0
    %287 = vmatpush1.msra.mxu0 %v69
    %288 = vmatprep.subr.mxu0 0.0
    %289 = vmatpush1.msra.mxu0 %v70
    %290 = vmatprep.subr.mxu0 0.0
    %291 = vmatpush1.msra.mxu0 %v71
    %292 = vmatprep.subr.mxu0 0.0
    %293 = vmatpush1.msra.mxu0 %v72
    %294 = vmatprep.subr.mxu0 0.0
    %295 = vmatpush1.msra.mxu0 %v73
    %296 = vmatprep.subr.mxu0 0.0
    %297 = vmatpush1.msra.mxu0 %v74
    %298 = vmatprep.subr.mxu0 0.0
    %299 = vmatpush1.msra.mxu0 %v75
    %300 = vmatprep.subr.mxu0 0.0
    %301 = vmatpush1.msra.mxu0 %v76
    %302 = vmatprep.subr.mxu0 0.0
    %303 = vmatpush1.msra.mxu0 %v77
    %304 = vmatprep.subr.mxu0 0.0
    %305 = vmatpush1.msra.mxu0 %v78
    %306 = vmatprep.subr.mxu0 0.0
    %307 = vmatpush1.msra.mxu0 %v79
    %308 = vmatprep.subr.mxu0 0.0
    %309 = vmatpush1.msra.mxu0 %v80
    %310 = vmatprep.subr.mxu0 0.0
    %311 = vmatpush1.msra.mxu0 %v81
    %312 = vmatprep.subr.mxu0 0.0
    %313 = vmatpush1.msra.mxu0 %v82
    %314 = vmatprep.subr.mxu0 0.0
    %315 = vmatpush1.msra.mxu0 %v83
    %316 = vmatprep.subr.mxu0 0.0
    %317 = vmatpush1.msra.mxu0 %v84
    %318 = vmatprep.subr.mxu0 0.0
    %319 = vmatpush1.msra.mxu0 %v85
    %320 = vmatprep.subr.mxu0 0.0
    %321 = vmatpush1.msra.mxu0 %v86
    %322 = vmatprep.subr.mxu0 0.0
    %323 = vmatpush1.msra.mxu0 %v87
    %324 = vmatprep.subr.mxu0 0.0
    %325 = vmatpush1.msra.mxu0 %v88
    %326 = vmatprep.subr.mxu0 0.0
    %327 = vmatpush1.msra.mxu0 %v89
    %328 = vmatprep.subr.mxu0 0.0
    %329 = vmatpush1.msra.mxu0 %v90
    %330 = vmatprep.subr.mxu0 0.0
    %331 = vmatpush1.msra.mxu0 %v91
    %332 = vmatprep.subr.mxu0 0.0
    %333 = vmatpush1.msra.mxu0 %v92
    %334 = vmatprep.subr.mxu0 0.0
    %335 = vmatpush1.msra.mxu0 %v93
    %336 = vmatprep.subr.mxu0 0.0
    %337 = vmatpush1.msra.mxu0 %v94
    %338 = vmatprep.subr.mxu0 0.0
    %339 = vmatpush1.msra.mxu0 %v95
    %340 = vmatprep.subr.mxu0 0.0
    %341 = vmatpush1.msra.mxu0 %v96
    %342 = vmatprep.subr.mxu0 0.0
    %343 = vmatpush1.msra.mxu0 %v97
    %344 = vmatprep.subr.mxu0 0.0
    %345 = vmatpush1.msra.mxu0 %v98
    %346 = vmatprep.subr.mxu0 0.0
    %347 = vmatpush1.msra.mxu0 %v99
    %348 = vmatprep.subr.mxu0 0.0
    %349 = vmatpush1.msra.mxu0 %v100
    %350 = vmatprep.mubr.f32.mxu0 %v190
    %351 = vmatmul.mubr.f32.gmra.mrb[0].mxu0 %v188
    %v352 = vpop.f32.mrb[0].mxu0
    %v353 = vadd.f32 %v283, %v352
    %v354 = vpop.f32.mrb[0].mxu0
    %355 = vdwg.mxu0
    %356 = vmatprep.subr.mxu0 0.0
    %357 = vmatpush1.msra.mxu0 %v101
    %358 = vmatprep.subr.mxu0 0.0
    %359 = vmatpush1.msra.mxu0 %v102
    %360 = vmatprep.subr.mxu0 0.0
    %361 = vmatpush1.msra.mxu0 %v103
    %362 = vmatprep.subr.mxu0 0.0
    %363 = vmatpush1.msra.mxu0 %v104
    %364 = vmatprep.subr.mxu0 0.0
    %365 = vmatpush1.msra.mxu0 %v105
    %366 = vmatprep.subr.mxu0 0.0
    %367 = vmatpush1.msra.mxu0 %v106
    %368 = vmatprep.subr.mxu0 0.0
    %369 = vmatpush1.msra.mxu0 %v107
    %370 = vmatprep.subr.mxu0 0.0
    %371 = vmatpush1.msra.mxu0 %v108
    %372 = vmatprep.subr.mxu0 0.0
    %373 = vmatpush1.msra.mxu0 %v109
    %374 = vmatprep.subr.mxu0 0.0
    %375 = vmatpush1.msra.mxu0 %v110
    %376 = vmatprep.subr.mxu0 0.0
    %377 = vmatpush1.msra.mxu0 %v111
    %378 = vmatprep.subr.mxu0 0.0
    %379 = vmatpush1.msra.mxu0 %v112
    %380 = vmatprep.subr.mxu0 0.0
    %381 = vmatpush1.msra.mxu0 %v113
    %382 = vmatprep.subr.mxu0 0.0
    %383 = vmatpush1.msra.mxu0 %v114
    %384 = vmatprep.subr.mxu0 0.0
    %385 = vmatpush1.msra.mxu0 %v115
    %386 = vmatprep.subr.mxu0 0.0
    %387 = vmatpush1.msra.mxu0 %v116
    %388 = vmatprep.subr.mxu0 0.0
    %389 = vmatpush1.msra.mxu0 %v117
    %390 = vmatprep.subr.mxu0 0.0
    %391 = vmatpush1.msra.mxu0 %v118
    %392 = vmatprep.subr.mxu0 0.0
    %393 = vmatpush1.msra.mxu0 %v119
    %394 = vmatprep.subr.mxu0 0.0
    %395 = vmatpush1.msra.mxu0 %v120
    %396 = vmatprep.subr.mxu0 0.0
    %397 = vmatpush1.msra.mxu0 %v121
    %398 = vmatprep.subr.mxu0 0.0
    %399 = vmatpush1.msra.mxu0 %v122
    %400 = vmatprep.subr.mxu0 0.0
    %401 = vmatpush1.msra.mxu0 %v123
    %402 = vmatprep.subr.mxu0 0.0
    %403 = vmatpush1.msra.mxu0 %v124
    %404 = vmatprep.subr.mxu0 0.0
    %405 = vmatpush1.msra.mxu0 %v125
    %406 = vmatprep.subr.mxu0 0.0
    %407 = vmatpush1.msra.mxu0 %v126
    %408 = vmatprep.subr.mxu0 0.0
    %409 = vmatpush1.msra.mxu0 %v127
    %410 = vmatprep.subr.mxu0 0.0
    %411 = vmatpush1.msra.mxu0 %v128
    %412 = vmatprep.subr.mxu0 0.0
    %413 = vmatpush1.msra.mxu0 %v129
    %414 = vmatprep.subr.mxu0 0.0
    %415 = vmatpush1.msra.mxu0 %v130
    %416 = vmatprep.subr.mxu0 0.0
    %417 = vmatpush1.msra.mxu0 %v131
    %418 = vmatprep.subr.mxu0 0.0
    %419 = vmatpush1.msra.mxu0 %v132
    %420 = vmatprep.mubr.f32.mxu0 %v206
    %421 = vmatmul.mubr.f32.gmra.mrb[0].mxu0 %v198
    %v422 = vpop.f32.mrb[0].mxu0
    %v423 = vadd.f32 %v353, %v422
    %v424 = vpop.f32.mrb[0].mxu0
    %425 = vdwg.mxu0
    %426 = vmatprep.subr.mxu0 0.0
    %427 = vmatpush1.msra.mxu0 %v133
    %428 = vmatprep.subr.mxu0 0.0
    %429 = vmatpush1.msra.mxu0 %v134
    %430 = vmatprep.subr.mxu0 0.0
    %431 = vmatpush1.msra.mxu0 %v135
    %432 = vmatprep.subr.mxu0 0.0
    %433 = vmatpush1.msra.mxu0 %v136
    %434 = vmatprep.subr.mxu0 0.0
    %435 = vmatpush1.msra.mxu0 %v137
    %436 = vmatprep.subr.mxu0 0.0
    %437 = vmatpush1.msra.mxu0 %v138
    %438 = vmatprep.subr.mxu0 0.0
    %439 = vmatpush1.msra.mxu0 %v139
    %440 = vmatprep.subr.mxu0 0.0
    %441 = vmatpush1.msra.mxu0 %v140
    %442 = vmatprep.subr.mxu0 0.0
    %443 = vmatpush1.msra.mxu0 %v141
    %444 = vmatprep.subr.mxu0 0.0
    %445 = vmatpush1.msra.mxu0 %v142
    %446 = vmatprep.subr.mxu0 0.0
    %447 = vmatpush1.msra.mxu0 %v143
    %448 = vmatprep.subr.mxu0 0.0
    %449 = vmatpush1.msra.mxu0 %v144
    %450 = vmatprep.subr.mxu0 0.0
    %451 = vmatpush1.msra.mxu0 %v145
    %452 = vmatprep.subr.mxu0 0.0
    %453 = vmatpush1.msra.mxu0 %v146
    %454 = vmatprep.subr.mxu0 0.0
    %455 = vmatpush1.msra.mxu0 %v147
    %456 = vmatprep.subr.mxu0 0.0
    %457 = vmatpush1.msra.mxu0 %v148
    %458 = vmatprep.subr.mxu0 0.0
    %459 = vmatpush1.msra.mxu0 %v149
    %460 = vmatprep.subr.mxu0 0.0
    %461 = vmatpush1.msra.mxu0 %v150
    %462 = vmatprep.subr.mxu0 0.0
    %463 = vmatpush1.msra.mxu0 %v151
    %464 = vmatprep.subr.mxu0 0.0
    %465 = vmatpush1.msra.mxu0 %v152
    %466 = vmatprep.subr.mxu0 0.0
    %467 = vmatpush1.msra.mxu0 %v153
    %468 = vmatprep.subr.mxu0 0.0
    %469 = vmatpush1.msra.mxu0 %v154
    %470 = vmatprep.subr.mxu0 0.0
    %471 = vmatpush1.msra.mxu0 %v155
    %472 = vmatprep.subr.mxu0 0.0
    %473 = vmatpush1.msra.mxu0 %v156
    %474 = vmatprep.subr.mxu0 0.0
    %475 = vmatpush1.msra.mxu0 %v157
    %476 = vmatprep.subr.mxu0 0.0
    %477 = vmatpush1.msra.mxu0 %v158
    %478 = vmatprep.subr.mxu0 0.0
    %479 = vmatpush1.msra.mxu0 %v159
    %480 = vmatprep.subr.mxu0 0.0
    %481 = vmatpush1.msra.mxu0 %v160
    %482 = vmatprep.subr.mxu0 0.0
    %483 = vmatpush1.msra.mxu0 %v161
    %484 = vmatprep.subr.mxu0 0.0
    %485 = vmatpush1.msra.mxu0 %v162
    %486 = vmatprep.subr.mxu0 0.0
    %487 = vmatpush1.msra.mxu0 %v163
    %488 = vmatprep.subr.mxu0 0.0
    %489 = vmatpush1.msra.mxu0 %v164
    %490 = vmatprep.mubr.f32.mxu0 %v207
    %491 = vmatmul.mubr.f32.gmra.mrb[0].mxu0 %v205
    %v492 = vpop.f32.mrb[0].mxu0
    %v493 = vadd.f32 %v423, %v492
    %v494 = vpop.f32.mrb[0].mxu0
    %495 = vdwg.mxu0
    %v496 = vmax.f32 %v493, 0.0
    %v497 = vld [vmem:[%s3] sm:$0xff]
    %v498 = vld [vmem:[%s3 + $0x8] sm:$0xff]
    %v499 = vld [vmem:[%s3 + $0x10] sm:$0xff]
    %v500 = vld [vmem:[%s3 + $0x18] sm:$0xff]
    %v501 = vld [vmem:[%s3 + $0x20] sm:$0xff]
    %v502 = vld [vmem:[%s3 + $0x28] sm:$0xff]
    %v503 = vld [vmem:[%s3 + $0x30] sm:$0xff]
    %v504 = vld [vmem:[%s3 + $0x38] sm:$0xff]
    %v505 = vld [vmem:[%s3 + $0x40] sm:$0xff]
    %v506 = vld [vmem:[%s3 + $0x48] sm:$0xff]
    %v507 = vld [vmem:[%s3 + $0x50] sm:$0xff]
    %v508 = vld [vmem:[%s3 + $0x58] sm:$0xff]
    %v509 = vld [vmem:[%s3 + $0x60] sm:$0xff]
    %v510 = vld [vmem:[%s3 + $0x68] sm:$0xff]
    %v511 = vld [vmem:[%s3 + $0x70] sm:$0xff]
    %v512 = vld [vmem:[%s3 + $0x78] sm:$0xff]
    %v513 = vld [vmem:[%s4] sm:$0x1]
    %v515 = vlaneseq
    %v516 = vshrl.u32 %v515, 7
    %v517 = vsub.s32 0, %v516
    %v518 = vrot.slane %v513, %v517
    %520 = vmatprep.subr.mxu0 0.0
    %521 = vmatpush1.msra.mxu0 %v497
    %522 = vmatprep.subr.mxu0 0.0
    %523 = vmatpush1.msra.mxu0 %v498
    %524 = vmatprep.subr.mxu0 0.0
    %525 = vmatpush1.msra.mxu0 %v499
    %526 = vmatprep.subr.mxu0 0.0
    %527 = vmatpush1.msra.mxu0 %v500
    %528 = vmatprep.subr.mxu0 0.0
    %529 = vmatpush1.msra.mxu0 %v501
    %530 = vmatprep.subr.mxu0 0.0
    %531 = vmatpush1.msra.mxu0 %v502
    %532 = vmatprep.subr.mxu0 0.0
    %533 = vmatpush1.msra.mxu0 %v503
    %534 = vmatprep.subr.mxu0 0.0
    %535 = vmatpush1.msra.mxu0 %v504
    %536 = vmatprep.subr.mxu0 0.0
    %537 = vmatpush1.msra.mxu0 %v505
    %538 = vmatprep.subr.mxu0 0.0
    %539 = vmatpush1.msra.mxu0 %v506
    %540 = vmatprep.subr.mxu0 0.0
    %541 = vmatpush1.msra.mxu0 %v507
    %542 = vmatprep.subr.mxu0 0.0
    %543 = vmatpush1.msra.mxu0 %v508
    %544 = vmatprep.subr.mxu0 0.0
    %545 = vmatpush1.msra.mxu0 %v509
    %546 = vmatprep.subr.mxu0 0.0
    %547 = vmatpush1.msra.mxu0 %v510
    %548 = vmatprep.subr.mxu0 0.0
    %549 = vmatpush1.msra.mxu0 %v511
    %550 = vmatprep.subr.mxu0 0.0
    %551 = vmatpush1.msra.mxu0 %v512
    %552 = vmatprep.subr.mxu0 0.0
    %553 = vmatpush1.msra.mxu0 0.0
    %554 = vmatprep.subr.mxu0 0.0
    %555 = vmatpush1.msra.mxu0 0.0
    %556 = vmatprep.subr.mxu0 0.0
    %557 = vmatpush1.msra.mxu0 0.0
    %558 = vmatprep.subr.mxu0 0.0
    %559 = vmatpush1.msra.mxu0 0.0
    %560 = vmatprep.subr.mxu0 0.0
    %561 = vmatpush1.msra.mxu0 0.0
    %562 = vmatprep.subr.mxu0 0.0
    %563 = vmatpush1.msra.mxu0 0.0
    %564 = vmatprep.subr.mxu0 0.0
    %565 = vmatpush1.msra.mxu0 0.0
    %566 = vmatprep.subr.mxu0 0.0
    %567 = vmatpush1.msra.mxu0 0.0
    %568 = vmatprep.subr.mxu0 0.0
    %569 = vmatpush1.msra.mxu0 0.0
    %570 = vmatprep.subr.mxu0 0.0
    %571 = vmatpush1.msra.mxu0 0.0
    %572 = vmatprep.subr.mxu0 0.0
    %573 = vmatpush1.msra.mxu0 0.0
    %574 = vmatprep.subr.mxu0 0.0
    %575 = vmatpush1.msra.mxu0 0.0
    %576 = vmatprep.subr.mxu0 0.0
    %577 = vmatpush1.msra.mxu0 0.0
    %578 = vmatprep.subr.mxu0 0.0
    %579 = vmatpush1.msra.mxu0 0.0
    %580 = vmatprep.subr.mxu0 0.0
    %581 = vmatpush1.msra.mxu0 0.0
    %582 = vmatprep.subr.mxu0 0.0
    %583 = vmatpush1.msra.mxu0 0.0
    %584 = vmatprep.mubr.f32.mxu0 0.0
    %585 = vmatmul.mubr.f32.gmra.mrb[0].mxu0 %v496
    %v586 = vpop.f32.mrb[0].mxu0
    %v587 = vadd.f32 %v518, %v586
    %v588 = vpop.f32.mrb[0].mxu0
    %589 = vdwg.mxu0
    %v590 = vmax.f32 %v587, 0.0
    %591 = vst [vmem:[#allocation5] sm:$0x3] %v590
    // Predicated region
    $region26: #{mlp_forward.1} parent=1 // pred_check
      _
    $region27: #{mlp_forward.1} parent=1 // pred_check_branch
      %593 = sbr.rel (0) target = $region29
    $region28: #{mlp_forward.1} parent=1 // pred_region
      %s595 = ssub.s32 32, 32
      %596 = vsyncadd [#allocation4], %s595
      %s598 = sshll.u32 [#allocation5], 4
      %s599 = int_to_ptr.vmem [resolvable:$true] %s598
      %601 = dma.vmem_to_hbm [thread:$0]  %s599, 32, %s5, [#allocation4]
    $region29: #{mlp_forward.1} parent=1 // pred_fallthru
      _
    // Predicated region
    $region30: #{mlp_forward.1} parent=1 // pred_check
      _
    $region31: #{mlp_forward.1} parent=1 // pred_check_branch
      %603 = sbr.rel (0) target = $region33
    $region32: #{mlp_forward.1} parent=1 // pred_region
      %604 = dma.done [#allocation4], 32
    $region33: #{mlp_forward.1} parent=1 // pred_fallthru
      _
    %605 = vsyncpa [#allocation3], 1
    %606 = vsyncpa [#allocation4], 1

</llo_original>
